<compile_context>
chip_gen: v6e
topology: v6e:2x2x1
jax: 0.10.0
libtpu: 0.0.40
codegen_flags: <defaults>
</compile_context>

<pallas_src>
import functools

import jax
import jax.numpy as jnp
from jax.experimental import pallas as pl
from jax.experimental.pallas import tpu as pltpu

H1, H2 = 16, 8                      # hidden sizes of fc1 / fc2
SLAB_ROWS, SLAB_COLS = 64, 128      # packed parameter slab (f32, 32 KiB)
R_W1, R_W2, R_W3 = 0, 16, 24        # row offsets inside the slab
R_B1, R_B2, R_B3 = 32, 48, 56


def _round_up(n, m):
    return ((n + m - 1) // m) * m


def mlp_kernel(x_ref, p_ref, o_ref, *, feat):
    x = x_ref[...]                                   # (TB, F), batch on sublanes
    w1 = p_ref[R_W1:R_W1 + H1, 0:feat]               # (16, F)  PyTorch layout (out, in)
    w2 = p_ref[R_W2:R_W2 + H2, 0:H1]                 # (8, 16)
    w3 = p_ref[R_W3:R_W3 + H2, 0:1]                  # (8, 1)   fc3 weight as a column
    b1 = p_ref[R_B1:R_B1 + H1, 0:1]                  # (16, 1)
    b2 = p_ref[R_B2:R_B2 + H2, 0:1]                  # (8, 1)
    b3 = p_ref[R_B3:R_B3 + 1, 0:1]                   # (1, 1)

    # fc1: W1 @ x.T -> (16, TB). Batch moves onto lanes; everything downstream
    # (activations and the final store) is lane-dense.
    h1 = jax.lax.dot_general(w1, x, (((1,), (1,)), ((), ())),
                             preferred_element_type=jnp.float32)
    h1 = jnp.maximum(h1 + b1, 0.0)                   # (16, TB)

    # fc2: (8,16) @ (16,TB) -> (8, TB)
    h2 = jnp.dot(w2, h1, preferred_element_type=jnp.float32)
    h2 = jnp.maximum(h2 + b2, 0.0)                   # (8, TB)

    # fc3 (N=1): VPU multiply + sublane reduce instead of an MXU matmul.
    logits = jnp.sum(w3 * h2, axis=0, keepdims=True) + b3     # (1, TB)
    o_ref[...] = jax.nn.sigmoid(logits)                       # lane-dense store


def pack_params(w1, b1, w2, b2, w3, b3):
    """Pack all parameters (PyTorch nn.Linear layout) into one f32 VMEM slab."""
    feat = w1.shape[1]
    slab = jnp.zeros((SLAB_ROWS, SLAB_COLS), jnp.float32)
    slab = slab.at[R_W1:R_W1 + H1, 0:feat].set(w1.astype(jnp.float32))
    slab = slab.at[R_W2:R_W2 + H2, 0:H1].set(w2.astype(jnp.float32))
    slab = slab.at[R_W3:R_W3 + H2, 0:1].set(w3.astype(jnp.float32).T)
    slab = slab.at[R_B1:R_B1 + H1, 0:1].set(b1.astype(jnp.float32)[:, None])
    slab = slab.at[R_B2:R_B2 + H2, 0:1].set(b2.astype(jnp.float32)[:, None])
    slab = slab.at[R_B3:R_B3 + 1, 0:1].set(b3.astype(jnp.float32).reshape(1, 1))
    return slab


def card_game_model(x, w1, b1, w2, b2, w3, b3, *, block_b=1024):
    """Forward pass of CardGameModel. Weights use the PyTorch nn.Linear layout:
    w1:(16,F) b1:(16,)  w2:(8,16) b2:(8,)  w3:(1,8) b3:(1,). Returns (B, 1) f32."""
    B, F = x.shape
    assert w1.shape == (H1, F) and w2.shape == (H2, H1) and w3.shape == (1, H2)

    # Batch tile on lanes (multiple of 128); pad B up to a whole number of tiles.
    tb = max(128, min(_round_up(block_b, 128), _round_up(B, 128)))
    b_pad = _round_up(B, tb)
    if b_pad != B:
        x = jnp.pad(x, ((0, b_pad - B), (0, 0)))
    slab = pack_params(w1, b1, w2, b2, w3, b3)

    out_row = pl.pallas_call(
        functools.partial(mlp_kernel, feat=F),
        out_shape=jax.ShapeDtypeStruct((1, b_pad), jnp.float32),
        grid=(pl.cdiv(b_pad, tb),),
        in_specs=[
            pl.BlockSpec((tb, F), lambda i: (i, 0)),                  # x: row tiles
            pl.BlockSpec((SLAB_ROWS, SLAB_COLS), lambda i: (0, 0)),   # slab: resident
        ],
        out_specs=pl.BlockSpec((1, tb), lambda i: (0, i)),            # lane-dense out
        compiler_params=pltpu.CompilerParams(
            dimension_semantics=("parallel",),       # shard batch tiles across TCs
            vmem_limit_bytes=32 * 1024 * 1024,
        ),
    )(x.astype(jnp.float32), slab)

    return out_row.reshape(b_pad, 1)[:B]             # (B, 1), matching the nn.Module


def init_linear(key, fan_in, fan_out):
    # nn.Linear default init: U(-1/sqrt(fan_in), 1/sqrt(fan_in)), PyTorch layout.
    kw, kb = jax.random.split(key)
    bound = 1.0 / float(fan_in) ** 0.5
    w = jax.random.uniform(kw, (fan_out, fan_in), jnp.float32, -bound, bound)
    b = jax.random.uniform(kb, (fan_out,), jnp.float32, -bound, bound)
    return w, b


def reference(x, w1, b1, w2, b2, w3, b3):
    hp = jax.lax.Precision.HIGHEST
    h1 = jnp.maximum(jnp.dot(x, w1.T, precision=hp) + b1, 0.0)
    h2 = jnp.maximum(jnp.dot(h1, w2.T, precision=hp) + b2, 0.0)
    return jax.nn.sigmoid(jnp.dot(h2, w3.T, precision=hp) + b3)


if __name__ == "__main__":
    F = 32  # X_train.shape[1] (synthetic, StandardScaler-like features)
    key = jax.random.PRNGKey(0)
    kx1, kx2, k1, k2, k3 = jax.random.split(key, 5)

    w1, b1 = init_linear(k1, F, H1)
    w2, b2 = init_linear(k2, H1, H2)
    w3, b3 = init_linear(k3, H2, 1)

    # Small batch (single grid step, padded 8 -> 128).
    x_small = jax.random.normal(kx1, (8, F), jnp.float32)
    out_small = jax.block_until_ready(card_game_model(x_small, w1, b1, w2, b2, w3, b3))
    ref_small = reference(x_small, w1, b1, w2, b2, w3, b3)
    assert out_small.shape == (8, 1)
    assert jnp.allclose(out_small, ref_small, atol=1e-4, rtol=1e-4)

    # Multi-tile batch (exercises the grid pipeline + padding 300 -> 384, 3 steps).
    x_big = jax.random.normal(kx2, (300, F), jnp.float32)
    out_big = jax.block_until_ready(
        card_game_model(x_big, w1, b1, w2, b2, w3, b3, block_b=128))
    ref_big = reference(x_big, w1, b1, w2, b2, w3, b3)
    assert out_big.shape == (300, 1)
    assert jnp.allclose(out_big, ref_big, atol=1e-4, rtol=1e-4)

    print("KERNEL_OK")
</pallas_src>

<mosaic_0001>
module attributes {stable_mosaic.version = 11 : i64} {
  func.func @mlp_kernel(%arg0: i32, %arg1: memref<128x32xf32, #tpu.memory_space<vmem>>, %arg2: memref<64x128xf32, #tpu.memory_space<vmem>>, %arg3: memref<1x128xf32, #tpu.memory_space<vmem>>) attributes {dimension_semantics = [#tpu.dimension_semantics<parallel>], iteration_bounds = array<i64: 1>, scalar_prefetch = 0 : i64, scratch_operands = 0 : i64, tpu.core_type = #tpu.core_type<tc>, window_params = [{transform_indices = @transform_0, window_bounds = array<i64: 128, 32>}, {pipeline_mode = #tpu.pipeline_mode<synchronous>, transform_indices = @transform_1, window_bounds = array<i64: 64, 128>}, {transform_indices = @transform_2, window_bounds = array<i64: 1, 128>}]} {
    %c0 = arith.constant 0 : index
    %c0_0 = arith.constant 0 : index
    %0 = vector.load %arg1[%c0, %c0_0] : memref<128x32xf32, #tpu.memory_space<vmem>>, vector<128x32xf32>
    %c0_1 = arith.constant 0 : index
    %c0_2 = arith.constant 0 : index
    %1 = vector.load %arg2[%c0_1, %c0_2] : memref<64x128xf32, #tpu.memory_space<vmem>>, vector<16x32xf32>
    %c16 = arith.constant 16 : index
    %c0_3 = arith.constant 0 : index
    %2 = vector.load %arg2[%c16, %c0_3] : memref<64x128xf32, #tpu.memory_space<vmem>>, vector<8x16xf32>
    %c24 = arith.constant 24 : index
    %c0_4 = arith.constant 0 : index
    %3 = vector.load %arg2[%c24, %c0_4] : memref<64x128xf32, #tpu.memory_space<vmem>>, vector<8x1xf32>
    %c32 = arith.constant 32 : index
    %c0_5 = arith.constant 0 : index
    %4 = vector.load %arg2[%c32, %c0_5] : memref<64x128xf32, #tpu.memory_space<vmem>>, vector<16x1xf32>
    %c48 = arith.constant 48 : index
    %c0_6 = arith.constant 0 : index
    %5 = vector.load %arg2[%c48, %c0_6] : memref<64x128xf32, #tpu.memory_space<vmem>>, vector<8x1xf32>
    %c56 = arith.constant 56 : index
    %c0_7 = arith.constant 0 : index
    %6 = vector.load %arg2[%c56, %c0_7] : memref<64x128xf32, #tpu.memory_space<vmem>>, vector<1x1xf32>
    %cst = arith.constant dense<0.000000e+00> : vector<16x128xf32>
    %7 = tpu.matmul %1, %0, %cst {dimension_numbers = #tpu.dot_dimension_numbers<[1], [1], [0], [0], [0, 0, 1, 0], [], []>} : vector<16x32xf32>, vector<128x32xf32>, vector<16x128xf32> -> vector<16x128xf32>
    %8 = vector.broadcast %4 : vector<16x1xf32> to vector<16x128xf32>
    %9 = arith.addf %7, %8 : vector<16x128xf32>
    %cst_8 = arith.constant 0.000000e+00 : f32
    %10 = vector.broadcast %cst_8 : f32 to vector<16x128xf32>
    %11 = arith.maximumf %9, %10 : vector<16x128xf32>
    %cst_9 = arith.constant dense<0.000000e+00> : vector<8x128xf32>
    %12 = tpu.matmul %2, %11, %cst_9 {dimension_numbers = #tpu.dot_dimension_numbers<[1], [0], [0], [1], [0, 0, 1, 1], [], []>} : vector<8x16xf32>, vector<16x128xf32>, vector<8x128xf32> -> vector<8x128xf32>
    %13 = vector.broadcast %5 : vector<8x1xf32> to vector<8x128xf32>
    %14 = arith.addf %12, %13 : vector<8x128xf32>
    %cst_10 = arith.constant 0.000000e+00 : f32
    %15 = vector.broadcast %cst_10 : f32 to vector<8x128xf32>
    %16 = arith.maximumf %14, %15 : vector<8x128xf32>
    %17 = vector.broadcast %3 : vector<8x1xf32> to vector<8x128xf32>
    %18 = arith.mulf %17, %16 : vector<8x128xf32>
    %cst_11 = arith.constant dense<0.000000e+00> : vector<128xf32>
    %19 = vector.multi_reduction <add>, %18, %cst_11 [0] : vector<8x128xf32> to vector<128xf32>
    %20 = vector.shape_cast %19 : vector<128xf32> to vector<1x128xf32>
    %21 = vector.broadcast %6 : vector<1x1xf32> to vector<1x128xf32>
    %22 = arith.addf %20, %21 : vector<1x128xf32>
    %23 = arith.negf %22 : vector<1x128xf32>
    %24 = math.exp %23 : vector<1x128xf32>
    %cst_12 = arith.constant 1.000000e+00 : f32
    %25 = vector.broadcast %cst_12 : f32 to vector<1x128xf32>
    %26 = arith.addf %25, %24 : vector<1x128xf32>
    %27 = arith.divf %25, %26 : vector<1x128xf32>
    %c0_13 = arith.constant 0 : index
    %c0_14 = arith.constant 0 : index
    %28 = vector.load %arg3[%c0_13, %c0_14] : memref<1x128xf32, #tpu.memory_space<vmem>>, vector<1x128xf32>
    tpu.vector_store %arg3[%c0_13, %c0_14], %27 {strides = array<i32>} : memref<1x128xf32, #tpu.memory_space<vmem>>, vector<1x128xf32>,
    return
  }
  func.func @transform_0(%arg0: i32) -> (i32, i32) {
    %c0_i32 = arith.constant 0 : i32
    %c0_i32_0 = arith.constant 0 : i32
    return %arg0, %c0_i32 : i32, i32
  }
  func.func @transform_1(%arg0: i32) -> (i32, i32) {
    %c0_i32 = arith.constant 0 : i32
    %c0_i32_0 = arith.constant 0 : i32
    %c0_i32_1 = arith.constant 0 : i32
    return %c0_i32, %c0_i32_0 : i32, i32
  }
  func.func @transform_2(%arg0: i32) -> (i32, i32) {
    %c0_i32 = arith.constant 0 : i32
    %c0_i32_0 = arith.constant 0 : i32
    return %c0_i32, %arg0 : i32, i32
  }
}

</mosaic_0001>

<llo_original>
// kernel: tpu_custom_call.1
$region0: #{tpu_custom_call.1}
  #allocation0 [shape = 'u32[]', space=smem, size = 0x4, offset = 0x4, fixed_abs, tag = 'smem constant byte address 0x4 - core index']
  #allocation1 [shape = 'u32[144,128]{1,0:T(1,128)}', space=vmem, size = 0x12000, scoped, tag = 'internal scratch']
  %s0 = inlined_call_operand.vmem [shape: f32[128,32], index: 0, kind: input, shape index: {}]
  %s1 = inlined_call_operand.vmem [shape: f32[64,128], index: 1, kind: input, shape index: {}]
  %s2 = inlined_call_operand.hbm [shape: f32[1,128], index: 2, kind: output, shape index: {}]
  %s3 = sld [smem:[#allocation0]]
  $region18: #{tpu_custom_call.1} parent=0
    _
  %s5 = ssub.s32 1, %s3
  %s6 = scalar_select 0, %s5, %s3
  $region1: #{tpu_custom_call.1} parent=0
    #allocation2 [shape = 'u8[512]{0}', space=vmem, size = 0x400, scoped, tag = 'output window, operand 0, single buffered']
    #allocation3 [shape = 's32[1]{0}', space=sflag, size = 0x4, scoped, tag = 'scoped memory for tpu_custom_call.1']
    %7 = vsyncpa [#allocation3], 0
    // Predicated region
    $region2: #{tpu_custom_call.1} parent=1 // pred_check
      _
    $region3: #{tpu_custom_call.1} parent=1 // pred_check_branch
      %9 = sbr.rel (0) target = $region5
    $region4: #{tpu_custom_call.1} parent=1 // pred_region
      _
    $region5: #{tpu_custom_call.1} parent=1 // pred_fallthru
      _
    // Predicated region
    $region6: #{tpu_custom_call.1} parent=1 // pred_check
      _
    $region7: #{tpu_custom_call.1} parent=1 // pred_check_branch
      %11 = sbr.rel (0) target = $region9
    $region8: #{tpu_custom_call.1} parent=1 // pred_region
      _
    $region9: #{tpu_custom_call.1} parent=1 // pred_fallthru
      _
    %v12 = vld [vmem:[%s0] sm:$0xff]
    %v13 = vld [vmem:[%s0 + $0x8] sm:$0xff]
    %v14 = vld [vmem:[%s0 + $0x10] sm:$0xff]
    %v15 = vld [vmem:[%s0 + $0x18] sm:$0xff]
    %v16 = vld [vmem:[%s0 + $0x20] sm:$0xff]
    %v17 = vld [vmem:[%s0 + $0x28] sm:$0xff]
    %v18 = vld [vmem:[%s0 + $0x30] sm:$0xff]
    %v19 = vld [vmem:[%s0 + $0x38] sm:$0xff]
    %v20 = vld [vmem:[%s0 + $0x40] sm:$0xff]
    %v21 = vld [vmem:[%s0 + $0x48] sm:$0xff]
    %v22 = vld [vmem:[%s0 + $0x50] sm:$0xff]
    %v23 = vld [vmem:[%s0 + $0x58] sm:$0xff]
    %v24 = vld [vmem:[%s0 + $0x60] sm:$0xff]
    %v25 = vld [vmem:[%s0 + $0x68] sm:$0xff]
    %v26 = vld [vmem:[%s0 + $0x70] sm:$0xff]
    %v27 = vld [vmem:[%s0 + $0x78] sm:$0xff]
    %v28 = vld [vmem:[%s1] sm:$0xff]
    %v29 = vld [vmem:[%s1 + $0x8] sm:$0xff]
    %v30 = vld [vmem:[%s1 + $0x10] sm:$0xff]
    %v31 = vld [vmem:[%s1 + $0x18] sm:$0xff]
    %v32 = vld [vmem:[%s1 + $0x20] sm:$0xff]
    %v33 = vld [vmem:[%s1 + $0x28] sm:$0xff]
    %v34 = vld [vmem:[%s1 + $0x30] sm:$0xff]
    %v35 = vld [vmem:[%s1 + $0x38] sm:$0x1]
    %37 = vset.pattern.permute.xlu0 0
    %38 = vperm.xlu0 %37, %v32
    %v39 = vpop.permute.xlu0 %38
    %42 = vset.pattern.permute.xlu0 0
    %43 = vperm.xlu0 %42, %v33
    %v44 = vpop.permute.xlu0 %43
    %vm46 = vcmask 261120
    %v48 = vsel %vm46, %v28, 0
    %v51 = vsel %vm46, %v29, 0
    %v54 = vsel %vm46, %v12, 0
    %v57 = vsel %vm46, %v13, 0
    %v60 = vsel %vm46, %v14, 0
    %v63 = vsel %vm46, %v15, 0
    %v66 = vsel %vm46, %v16, 0
    %v69 = vsel %vm46, %v17, 0
    %v72 = vsel %vm46, %v18, 0
    %v75 = vsel %vm46, %v19, 0
    %v78 = vsel %vm46, %v20, 0
    %v81 = vsel %vm46, %v21, 0
    %v84 = vsel %vm46, %v22, 0
    %v87 = vsel %vm46, %v23, 0
    %v90 = vsel %vm46, %v24, 0
    %v93 = vsel %vm46, %v25, 0
    %v96 = vsel %vm46, %v26, 0
    %v99 = vsel %vm46, %v27, 0
    %101 = vmatprep.subr.mxu0 0.0
    %102 = vmatpush1.xpose.msra.mxu0 %v99
    %103 = vmatprep.subr.mxu0 0.0
    %104 = vmatpush1.xpose.msra.mxu0 %v96
    %105 = vmatprep.subr.mxu0 0.0
    %106 = vmatpush1.xpose.msra.mxu0 %v93
    %107 = vmatprep.subr.mxu0 0.0
    %108 = vmatpush1.xpose.msra.mxu0 %v90
    %109 = vmatprep.subr.mxu0 0.0
    %110 = vmatpush1.xpose.msra.mxu0 %v87
    %111 = vmatprep.subr.mxu0 0.0
    %112 = vmatpush1.xpose.msra.mxu0 %v84
    %113 = vmatprep.subr.mxu0 0.0
    %114 = vmatpush1.xpose.msra.mxu0 %v81
    %115 = vmatprep.subr.mxu0 0.0
    %116 = vmatpush1.xpose.msra.mxu0 %v78
    %117 = vmatprep.subr.mxu0 0.0
    %118 = vmatpush1.xpose.msra.mxu0 %v75
    %119 = vmatprep.subr.mxu0 0.0
    %120 = vmatpush1.xpose.msra.mxu0 %v72
    %121 = vmatprep.subr.mxu0 0.0
    %122 = vmatpush1.xpose.msra.mxu0 %v69
    %123 = vmatprep.subr.mxu0 0.0
    %124 = vmatpush1.xpose.msra.mxu0 %v66
    %125 = vmatprep.subr.mxu0 0.0
    %126 = vmatpush1.xpose.msra.mxu0 %v63
    %127 = vmatprep.subr.mxu0 0.0
    %128 = vmatpush1.xpose.msra.mxu0 %v60
    %129 = vmatprep.subr.mxu0 0.0
    %130 = vmatpush1.xpose.msra.mxu0 %v57
    %131 = vmatprep.subr.mxu0 0.0
    %132 = vmatpush1.xpose.msra.mxu0 %v54
    %133 = vmatprep.subr.mxu0 0.0
    %134 = vmatpush2.xpose.msra.mxu0 0.0
    %135 = vmatprep.subr.mxu0 0.0
    %136 = vmatpush2.xpose.msra.mxu0 0.0
    %137 = vmatprep.subr.mxu0 0.0
    %138 = vmatpush2.xpose.msra.mxu0 0.0
    %139 = vmatprep.subr.mxu0 0.0
    %140 = vmatpush2.xpose.msra.mxu0 0.0
    %141 = vmatprep.subr.mxu0 0.0
    %142 = vmatpush2.xpose.msra.mxu0 0.0
    %143 = vmatprep.subr.mxu0 0.0
    %144 = vmatpush2.xpose.msra.mxu0 0.0
    %145 = vmatprep.subr.mxu0 0.0
    %146 = vmatpush2.xpose.msra.mxu0 0.0
    %147 = vmatprep.subr.mxu0 0.0
    %148 = vmatpush2.xpose.msra.mxu0 0.0
    %149 = vmatprep.subr.mxu0 0.0
    %150 = vmatpush2.xpose.msra.mxu0 0.0
    %151 = vmatprep.subr.mxu0 0.0
    %152 = vmatpush2.xpose.msra.mxu0 0.0
    %153 = vmatprep.subr.mxu0 0.0
    %154 = vmatpush2.xpose.msra.mxu0 0.0
    %155 = vmatprep.subr.mxu0 0.0
    %156 = vmatpush2.xpose.msra.mxu0 0.0
    %157 = vmatprep.subr.mxu0 0.0
    %158 = vmatpush2.xpose.msra.mxu0 0.0
    %159 = vmatprep.subr.mxu0 0.0
    %160 = vmatpush2.xpose.msra.mxu0 0.0
    %161 = vmatprep.subr.mxu0 0.0
    %162 = vmatpush2.xpose.msra.mxu0 0.0
    %163 = vmatprep.subr.mxu0 0.0
    %164 = vmatpush2.xpose.msra.mxu0 0.0
    %165 = vmatprep.mubr.f32.mxu0 0.0
    %166 = vmatmul.mubr.f32.gmra.mxu0 %v48
    %v167 = vpop.f32.mrf.mxu0
    %v168 = vadd.f32 %v39, %v167
    %v169 = vpop.f32.mrf.mxu0
    %170 = vmatprep.mubr.f32.mxu0 0.0
    %171 = vmatmul.mubr.f32.gmra.mxu0 %v51
    %v172 = vpop.f32.mrf.mxu0
    %v173 = vadd.f32 %v44, %v172
    %v174 = vpop.f32.mrf.mxu0
    %175 = vdwg.mxu0
    %v176 = vmax.f32 %v168, 0.0
    %v177 = vmax.f32 %v173, 0.0
    %179 = vset.pattern.permute.xlu0 0
    %180 = vperm.xlu0 %179, %v34
    %v181 = vpop.permute.xlu0 %180
    %vm183 = vcmask 130048
    %v185 = vsel %vm183, %v30, 0
    %187 = vmatprep.subr.mxu0 0.0
    %188 = vmatpush1.msra.mxu0 0.0
    %189 = vmatprep.subr.mxu0 0.0
    %190 = vmatpush1.msra.mxu0 0.0
    %191 = vmatprep.subr.mxu0 0.0
    %192 = vmatpush1.msra.mxu0 0.0
    %193 = vmatprep.subr.mxu0 0.0
    %194 = vmatpush1.msra.mxu0 0.0
    %195 = vmatprep.subr.mxu0 0.0
    %196 = vmatpush1.msra.mxu0 0.0
    %197 = vmatprep.subr.mxu0 0.0
    %198 = vmatpush1.msra.mxu0 0.0
    %199 = vmatprep.subr.mxu0 0.0
    %200 = vmatpush1.msra.mxu0 0.0
    %201 = vmatprep.subr.mxu0 0.0
    %202 = vmatpush1.msra.mxu0 0.0
    %203 = vmatprep.subr.mxu0 0.0
    %204 = vmatpush1.msra.mxu0 0.0
    %205 = vmatprep.subr.mxu0 0.0
    %206 = vmatpush1.msra.mxu0 0.0
    %207 = vmatprep.subr.mxu0 0.0
    %208 = vmatpush1.msra.mxu0 0.0
    %209 = vmatprep.subr.mxu0 0.0
    %210 = vmatpush1.msra.mxu0 0.0
    %211 = vmatprep.subr.mxu0 0.0
    %212 = vmatpush1.msra.mxu0 0.0
    %213 = vmatprep.subr.mxu0 0.0
    %214 = vmatpush1.msra.mxu0 0.0
    %215 = vmatprep.subr.mxu0 0.0
    %216 = vmatpush1.msra.mxu0 %v177
    %217 = vmatprep.subr.mxu0 0.0
    %218 = vmatpush1.msra.mxu0 %v176
    %219 = vmatprep.subr.mxu0 0.0
    %220 = vmatpush2.msra.mxu0 0.0
    %221 = vmatprep.subr.mxu0 0.0
    %222 = vmatpush2.msra.mxu0 0.0
    %223 = vmatprep.subr.mxu0 0.0
    %224 = vmatpush2.msra.mxu0 0.0
    %225 = vmatprep.subr.mxu0 0.0
    %226 = vmatpush2.msra.mxu0 0.0
    %227 = vmatprep.subr.mxu0 0.0
    %228 = vmatpush2.msra.mxu0 0.0
    %229 = vmatprep.subr.mxu0 0.0
    %230 = vmatpush2.msra.mxu0 0.0
    %231 = vmatprep.subr.mxu0 0.0
    %232 = vmatpush2.msra.mxu0 0.0
    %233 = vmatprep.subr.mxu0 0.0
    %234 = vmatpush2.msra.mxu0 0.0
    %235 = vmatprep.subr.mxu0 0.0
    %236 = vmatpush2.msra.mxu0 0.0
    %237 = vmatprep.subr.mxu0 0.0
    %238 = vmatpush2.msra.mxu0 0.0
    %239 = vmatprep.subr.mxu0 0.0
    %240 = vmatpush2.msra.mxu0 0.0
    %241 = vmatprep.subr.mxu0 0.0
    %242 = vmatpush2.msra.mxu0 0.0
    %243 = vmatprep.subr.mxu0 0.0
    %244 = vmatpush2.msra.mxu0 0.0
    %245 = vmatprep.subr.mxu0 0.0
    %246 = vmatpush2.msra.mxu0 0.0
    %247 = vmatprep.subr.mxu0 0.0
    %248 = vmatpush2.msra.mxu0 0.0
    %249 = vmatprep.subr.mxu0 0.0
    %250 = vmatpush2.msra.mxu0 0.0
    %251 = vmatprep.mubr.f32.mxu0 0.0
    %252 = vmatmul.mubr.f32.gmra.mxu0 %v185
    %v253 = vpop.f32.mrf.mxu0
    %v254 = vadd.f32 %v181, %v253
    %v255 = vpop.f32.mrf.mxu0
    %256 = vdwg.mxu0
    %v257 = vmax.f32 %v254, 0.0
    %259 = vset.pattern.permute.xlu0 0
    %260 = vperm.xlu0 %259, %v31
    %v261 = vpop.permute.xlu0 %260
    %v263 = vmul.f32 %v261, %v257
    %v264 = vrot.slane %v263, 4
    %v265 = vadd.f32 %v263, %v264
    %v266 = vrot.slane %v265, 2
    %v267 = vadd.f32 %v265, %v266
    %v268 = vrot.slane %v267, 1
    %v269 = vadd.f32 %v267, %v268
    %271 = vset.pattern.permute.xlu0 0
    %272 = vperm.xlu0 %271, %v35
    %v273 = vpop.permute.xlu0 %272
    %v275 = vadd.f32 %v269, %v273
    %v276 = vxor.u32 %v275, 2147483648
    %v277 = vmul.f32 %v276, 1.442695
    %v278 = vpow.pop %v277
    %v279 = vadd.f32 %v278, 1.0
    %v280 = vrcp.pop %v279
    %v281 = vmul.f32 1.0, %v280
    %282 = vst [vmem:[#allocation2] sm:$0x1] %v281
    // Predicated region
    $region10: #{tpu_custom_call.1} parent=1 // pred_check
      _
    $region11: #{tpu_custom_call.1} parent=1 // pred_check_branch
      %284 = sbr.rel (0) target = $region13
    $region12: #{tpu_custom_call.1} parent=1 // pred_region
      %s286 = ssub.s32 16, 16
      %287 = vsyncadd [#allocation3], %s286
      %s289 = sshll.u32 [#allocation2], 4
      %s290 = int_to_ptr.vmem [resolvable:$true] %s289
      %292 = dma.vmem_to_hbm [thread:$0]  %s290, 16, %s2, [#allocation3]
    $region13: #{tpu_custom_call.1} parent=1 // pred_fallthru
      _
    // Predicated region
    $region14: #{tpu_custom_call.1} parent=1 // pred_check
      _
    $region15: #{tpu_custom_call.1} parent=1 // pred_check_branch
      %294 = sbr.rel (0) target = $region17
    $region16: #{tpu_custom_call.1} parent=1 // pred_region
      %295 = dma.done [#allocation3], 16
    $region17: #{tpu_custom_call.1} parent=1 // pred_fallthru
      _
    %296 = vsyncpa [#allocation3], 1

</llo_original>
